<compile_context>
chip_gen: v7x
topology: tpu7x:2x2x1
jax: 0.10.0
libtpu: 0.0.40
codegen_flags: <defaults>
</compile_context>

<pallas_src>
import functools

import jax
import jax.numpy as jnp
from jax.experimental import pallas as pl
from jax.experimental.pallas import tpu as pltpu


FOUT_PAD = 128  # lane-dense output width (one full vreg lane dimension)


def _gcn_fused_kernel(x_ref, lhat_ref, w10_ref, w11_ref, b1_ref,
                      w20_ref, w21_ref, b2_ref, out_ref):
    """Fused forward (eval mode):
         h      = relu(x @ W1_0 + (lhat @ x) @ W1_1 + b1)
         logits = h @ W2_0p + lhat @ (h @ W2_1p) + b2p     (lane-padded to 128)
         out    = log_softmax(logits)   # padded lanes carry b2p = -1e30
    """
    x = x_ref[...]        # (N, Fin) bf16
    lhat = lhat_ref[...]  # (N, N)   bf16 -- loaded once, reused by both layers

    # ---- layer 1: two dots + add (no concat, no double casts) ----
    tx1 = jnp.dot(lhat, x, preferred_element_type=jnp.float32)           # (N, Fin)
    h = (jnp.dot(x, w10_ref[...], preferred_element_type=jnp.float32)
         + jnp.dot(tx1.astype(jnp.bfloat16), w11_ref[...],
                   preferred_element_type=jnp.float32)
         + b1_ref[...])                                                   # (N, HID)
    h = jnp.maximum(h, 0.0)  # ReLU in f32 (VPU)
    # TODO(synk): training-mode F.dropout would need pltpu.prng_seed +
    # pltpu.prng_random_bits masking here; modeled as eval-mode identity.
    h_bf = h.astype(jnp.bfloat16)

    # ---- layer 2 (reassociated): apply the small weights before lhat so the
    # N^2-sized matmul carries the padded output width rather than HID ----
    a = jnp.dot(h_bf, w20_ref[...], preferred_element_type=jnp.float32)   # (N, 128)
    t = jnp.dot(h_bf, w21_ref[...], preferred_element_type=jnp.float32)   # (N, 128)
    b = jnp.dot(lhat, t.astype(jnp.bfloat16),
                preferred_element_type=jnp.float32)                       # (N, 128)
    # Padded W2 columns are exactly zero and padded b2 lanes are -1e30, so the
    # padded lanes fall out of the softmax for free (no iota/where pass).
    logits = a + b + b2_ref[...]

    # Numerically stable log_softmax in f32; exp(-1e30 - m) underflows to 0.
    m = jnp.max(logits, axis=-1, keepdims=True)
    s = logits - m
    out = s - jnp.log(jnp.sum(jnp.exp(s), axis=-1, keepdims=True))
    out_ref[...] = out.astype(out_ref.dtype)   # full-lane (unmasked) store


def prepare_params(params, fout_pad=FOUT_PAD):
    """One-time parameter preprocessing, hoisted out of the per-call path:
    bf16 casts, layer-2 lane padding to 128 output lanes, and the softmax
    padding mask baked into b2 (-1e30 in padded lanes)."""
    hid = params["w1_0"].shape[1]
    fout = params["w2_0"].shape[1]
    col_pad = ((0, 0), (0, fout_pad - fout))
    prep = {
        "w1_0": params["w1_0"].astype(jnp.bfloat16),                 # (Fin, HID)
        "w1_1": params["w1_1"].astype(jnp.bfloat16),                 # (Fin, HID)
        "b1": params["b1"].reshape(1, hid).astype(jnp.float32),      # (1, HID)
        "w2_0": jnp.pad(params["w2_0"], col_pad).astype(jnp.bfloat16),  # (HID, 128)
        "w2_1": jnp.pad(params["w2_1"], col_pad).astype(jnp.bfloat16),  # (HID, 128)
        "b2": jnp.pad(params["b2"].reshape(1, fout).astype(jnp.float32),
                      col_pad, constant_values=-1e30),               # (1, 128)
    }
    return prep, fout


def net_forward(x, lhat, prep, *, fout):
    """Forward pass of the PyTorch `Net` module (eval mode).
    `prep` must come from prepare_params (called once, not per step)."""
    N, _ = x.shape
    vmem = pl.BlockSpec(memory_space=pltpu.MemorySpace.VMEM)
    out_pad = pl.pallas_call(
        _gcn_fused_kernel,
        out_shape=jax.ShapeDtypeStruct((N, FOUT_PAD), jnp.float32),
        in_specs=[vmem] * 8,
        out_specs=vmem,
        # No grid: a single resident VMEM tile, so no per-step pipeline
        # machinery or double buffering.  If N grows:
        #   * add a node-row grid axis marked "parallel" (>=256-row tiles on
        #     v7x to use both TensorCores / fill MXU rows; 128 rows on v5e),
        #   * tile lhat rows via a BlockSpec (or pl.ANY + manual DMA) so a
        #     resident bf16 N^2 operand fits v7x's 64 MiB VMEM,
        #   * raise pltpu.CompilerParams(vmem_limit_bytes=...) above the
        #     scoped defaults (16/32/32 MiB on v5e/v6e/v7x).
    )(x.astype(jnp.bfloat16), lhat.astype(jnp.bfloat16),
      prep["w1_0"], prep["w1_1"], prep["b1"],
      prep["w2_0"], prep["w2_1"], prep["b2"])
    return out_pad[:, :fout]


def net_forward_ref(x, lhat, params):
    """Pure-JAX f32 reference (PyG ChebConv K=2, sym norm, lambda_max=2)."""
    h = jnp.maximum(
        x @ params["w1_0"] + (lhat @ x) @ params["w1_1"] + params["b1"], 0.0)
    logits = h @ params["w2_0"] + (lhat @ h) @ params["w2_1"] + params["b2"]
    return jax.nn.log_softmax(logits, axis=-1)


def glorot(key, shape):
    fan_in, fan_out = shape
    limit = jnp.sqrt(6.0 / (fan_in + fan_out))
    return jax.random.uniform(key, shape, jnp.float32, -limit, limit)


def build_graph_operator(num_nodes):
    """Dense L_hat = -D^{-1/2} A D^{-1/2} for a deterministic small graph
    (ring + chords), zero diagonal — exactly what ChebConv(K=2) uses."""
    i = jnp.arange(num_nodes)
    ring_dst = (i + 1) % num_nodes
    chord_dst = (i + 5) % num_nodes
    A = jnp.zeros((num_nodes, num_nodes), jnp.float32)
    A = A.at[i, ring_dst].set(1.0).at[ring_dst, i].set(1.0)
    A = A.at[i, chord_dst].set(1.0).at[chord_dst, i].set(1.0)
    A = A * (1.0 - jnp.eye(num_nodes, dtype=jnp.float32))  # no self loops
    deg = A.sum(axis=1)
    dis = jnp.where(deg > 0, jax.lax.rsqrt(jnp.maximum(deg, 1e-12)), 0.0)
    return -(dis[:, None] * A * dis[None, :])


if __name__ == "__main__":
    # Small synthetic shapes consistent with the module: N nodes, F input
    # features, hidden = 16, output dim = F (conv2 maps 16 -> num_features).
    N, F_IN, HID = 32, 8, 16

    key = jax.random.PRNGKey(0)
    kx, k10, k11, k20, k21 = jax.random.split(key, 5)

    # Row-normalized non-negative features (mimics T.NormalizeFeatures()).
    x_raw = jax.random.uniform(kx, (N, F_IN), jnp.float32)
    x = x_raw / jnp.maximum(x_raw.sum(axis=1, keepdims=True), 1e-12)

    lhat = build_graph_operator(N)

    params = {
        "w1_0": glorot(k10, (F_IN, HID)),
        "w1_1": glorot(k11, (F_IN, HID)),
        "b1": jnp.zeros((HID,), jnp.float32),
        "w2_0": glorot(k20, (HID, F_IN)),
        "w2_1": glorot(k21, (HID, F_IN)),
        "b2": jnp.zeros((F_IN,), jnp.float32),
    }

    prep, fout = prepare_params(params)           # one-time weight prep
    fwd = jax.jit(functools.partial(net_forward, fout=fout))

    out = fwd(x, lhat, prep)
    jax.block_until_ready(out)

    assert out.shape == (N, F_IN)
    # log_softmax rows must sum to 1 in probability space.
    assert bool(jnp.all(jnp.abs(jnp.exp(out).sum(axis=1) - 1.0) < 1e-4))
    # f32 reference comparison (bf16 MXU operands -> loose tolerance).
    ref = net_forward_ref(x, lhat, params)
    max_err = jnp.max(jnp.abs(out - ref))
    assert bool(max_err < 8e-2), float(max_err)
    print("KERNEL_OK")
</pallas_src>

<mosaic_0001>
module attributes {stable_mosaic.version = 11 : i64} {
  func.func @_gcn_fused_kernel(%arg0: memref<32x8xbf16, #tpu.memory_space<vmem>>, %arg1: memref<32x32xbf16, #tpu.memory_space<vmem>>, %arg2: memref<8x16xbf16, #tpu.memory_space<vmem>>, %arg3: memref<8x16xbf16, #tpu.memory_space<vmem>>, %arg4: memref<1x16xf32, #tpu.memory_space<vmem>>, %arg5: memref<16x128xbf16, #tpu.memory_space<vmem>>, %arg6: memref<16x128xbf16, #tpu.memory_space<vmem>>, %arg7: memref<1x128xf32, #tpu.memory_space<vmem>>, %arg8: memref<32x128xf32, #tpu.memory_space<vmem>>) attributes {dimension_semantics = [], scalar_prefetch = 0 : i64, scratch_operands = 0 : i64, tpu.core_type = #tpu.core_type<tc>} {
    %c0 = arith.constant 0 : index
    %c0_0 = arith.constant 0 : index
    %0 = vector.load %arg0[%c0, %c0_0] : memref<32x8xbf16, #tpu.memory_space<vmem>>, vector<32x8xbf16>
    %c0_1 = arith.constant 0 : index
    %c0_2 = arith.constant 0 : index
    %1 = vector.load %arg1[%c0_1, %c0_2] : memref<32x32xbf16, #tpu.memory_space<vmem>>, vector<32x32xbf16>
    %cst = arith.constant dense<0.000000e+00> : vector<32x8xf32>
    %2 = tpu.matmul %1, %0, %cst {dimension_numbers = #tpu.dot_dimension_numbers<[1], [0], [0], [1], [0, 0, 1, 1], [], []>} : vector<32x32xbf16>, vector<32x8xbf16>, vector<32x8xf32> -> vector<32x8xf32>
    %c0_3 = arith.constant 0 : index
    %c0_4 = arith.constant 0 : index
    %3 = vector.load %arg2[%c0_3, %c0_4] : memref<8x16xbf16, #tpu.memory_space<vmem>>, vector<8x16xbf16>
    %cst_5 = arith.constant dense<0.000000e+00> : vector<32x16xf32>
    %4 = tpu.matmul %0, %3, %cst_5 {dimension_numbers = #tpu.dot_dimension_numbers<[1], [0], [0], [1], [0, 0, 1, 1], [], []>} : vector<32x8xbf16>, vector<8x16xbf16>, vector<32x16xf32> -> vector<32x16xf32>
    %5 = arith.truncf %2 : vector<32x8xf32> to vector<32x8xbf16>
    %c0_6 = arith.constant 0 : index
    %c0_7 = arith.constant 0 : index
    %6 = vector.load %arg3[%c0_6, %c0_7] : memref<8x16xbf16, #tpu.memory_space<vmem>>, vector<8x16xbf16>
    %cst_8 = arith.constant dense<0.000000e+00> : vector<32x16xf32>
    %7 = tpu.matmul %5, %6, %cst_8 {dimension_numbers = #tpu.dot_dimension_numbers<[1], [0], [0], [1], [0, 0, 1, 1], [], []>} : vector<32x8xbf16>, vector<8x16xbf16>, vector<32x16xf32> -> vector<32x16xf32>
    %8 = arith.addf %4, %7 : vector<32x16xf32>
    %c0_9 = arith.constant 0 : index
    %c0_10 = arith.constant 0 : index
    %9 = vector.load %arg4[%c0_9, %c0_10] : memref<1x16xf32, #tpu.memory_space<vmem>>, vector<1x16xf32>
    %10 = vector.broadcast %9 : vector<1x16xf32> to vector<32x16xf32>
    %11 = arith.addf %8, %10 : vector<32x16xf32>
    %cst_11 = arith.constant 0.000000e+00 : f32
    %12 = vector.broadcast %cst_11 : f32 to vector<32x16xf32>
    %13 = arith.maximumf %11, %12 : vector<32x16xf32>
    %14 = arith.truncf %13 : vector<32x16xf32> to vector<32x16xbf16>
    %c0_12 = arith.constant 0 : index
    %c0_13 = arith.constant 0 : index
    %15 = vector.load %arg5[%c0_12, %c0_13] : memref<16x128xbf16, #tpu.memory_space<vmem>>, vector<16x128xbf16>
    %cst_14 = arith.constant dense<0.000000e+00> : vector<32x128xf32>
    %16 = tpu.matmul %14, %15, %cst_14 {dimension_numbers = #tpu.dot_dimension_numbers<[1], [0], [0], [1], [0, 0, 1, 1], [], []>} : vector<32x16xbf16>, vector<16x128xbf16>, vector<32x128xf32> -> vector<32x128xf32>
    %c0_15 = arith.constant 0 : index
    %c0_16 = arith.constant 0 : index
    %17 = vector.load %arg6[%c0_15, %c0_16] : memref<16x128xbf16, #tpu.memory_space<vmem>>, vector<16x128xbf16>
    %cst_17 = arith.constant dense<0.000000e+00> : vector<32x128xf32>
    %18 = tpu.matmul %14, %17, %cst_17 {dimension_numbers = #tpu.dot_dimension_numbers<[1], [0], [0], [1], [0, 0, 1, 1], [], []>} : vector<32x16xbf16>, vector<16x128xbf16>, vector<32x128xf32> -> vector<32x128xf32>
    %19 = arith.truncf %18 : vector<32x128xf32> to vector<32x128xbf16>
    %cst_18 = arith.constant dense<0.000000e+00> : vector<32x128xf32>
    %20 = tpu.matmul %1, %19, %cst_18 {dimension_numbers = #tpu.dot_dimension_numbers<[1], [0], [0], [1], [0, 0, 1, 1], [], []>} : vector<32x32xbf16>, vector<32x128xbf16>, vector<32x128xf32> -> vector<32x128xf32>
    %21 = arith.addf %16, %20 : vector<32x128xf32>
    %c0_19 = arith.constant 0 : index
    %c0_20 = arith.constant 0 : index
    %22 = vector.load %arg7[%c0_19, %c0_20] : memref<1x128xf32, #tpu.memory_space<vmem>>, vector<1x128xf32>
    %23 = vector.broadcast %22 : vector<1x128xf32> to vector<32x128xf32>
    %24 = arith.addf %21, %23 : vector<32x128xf32>
    %cst_21 = arith.constant dense<0xFF800000> : vector<32xf32>
    %25 = vector.multi_reduction <maximumf>, %24, %cst_21 [1] : vector<32x128xf32> to vector<32xf32>
    %26 = vector.shape_cast %25 : vector<32xf32> to vector<32x1xf32>
    %27 = vector.broadcast %26 : vector<32x1xf32> to vector<32x128xf32>
    %28 = arith.subf %24, %27 : vector<32x128xf32>
    %29 = math.exp %28 : vector<32x128xf32>
    %cst_22 = arith.constant dense<0.000000e+00> : vector<32xf32>
    %30 = vector.multi_reduction <add>, %29, %cst_22 [1] : vector<32x128xf32> to vector<32xf32>
    %31 = vector.shape_cast %30 : vector<32xf32> to vector<32x1xf32>
    %32 = math.log %31 : vector<32x1xf32>
    %33 = vector.broadcast %32 : vector<32x1xf32> to vector<32x128xf32>
    %34 = arith.subf %28, %33 : vector<32x128xf32>
    %c0_23 = arith.constant 0 : index
    %c0_24 = arith.constant 0 : index
    %35 = vector.load %arg8[%c0_23, %c0_24] : memref<32x128xf32, #tpu.memory_space<vmem>>, vector<32x128xf32>
    tpu.vector_store %arg8[%c0_23, %c0_24], %34 {strides = array<i32>} : memref<32x128xf32, #tpu.memory_space<vmem>>, vector<32x128xf32>,
    return
  }
}

</mosaic_0001>

<llo_original>
// kernel: net_forward.1
$region0: #{net_forward.1}
  #allocation0 [shape = 'u32[]', space=smem, size = 0x4, offset = 0x4, fixed_abs, tag = 'smem constant byte address 0x4 - core index']
  #allocation1 [shape = 'u32[144,128]{1,0:T(1,128)}', space=vmem, size = 0x12000, scoped, tag = 'internal scratch']
  %s0 = inlined_call_operand.vmem [shape: bf16[32,8], index: 0, kind: input, shape index: {}]
  %s1 = inlined_call_operand.vmem [shape: bf16[32,32], index: 1, kind: input, shape index: {}]
  %s2 = inlined_call_operand.vmem [shape: bf16[8,16], index: 2, kind: input, shape index: {}]
  %s3 = inlined_call_operand.vmem [shape: bf16[8,16], index: 3, kind: input, shape index: {}]
  %s4 = inlined_call_operand.vmem [shape: f32[1,16], index: 4, kind: input, shape index: {}]
  %s5 = inlined_call_operand.vmem [shape: bf16[16,128], index: 5, kind: input, shape index: {}]
  %s6 = inlined_call_operand.vmem [shape: bf16[16,128], index: 6, kind: input, shape index: {}]
  %s7 = inlined_call_operand.vmem [shape: f32[1,128], index: 7, kind: input, shape index: {}]
  %s8 = inlined_call_operand.vmem [shape: f32[32,128], index: 8, kind: output, shape index: {}]
  %s9 = sld [smem:[#allocation0]]
  $region42: #{net_forward.1} parent=0
    _
  %s11 = ssub.s32 1, %s9
  %s12 = scalar_select 0, %s11, %s9
  // Predicated region
  $region2: #{net_forward.1} parent=0 // pred_check
    _
  $region3: #{net_forward.1} parent=0 // pred_check_branch
    %14 = sbr.rel (0) target = $region5
  $region4: #{net_forward.1} parent=0 // pred_region
    _
  $region5: #{net_forward.1} parent=0 // pred_fallthru
    _
  // Predicated region
  $region6: #{net_forward.1} parent=0 // pred_check
    _
  $region7: #{net_forward.1} parent=0 // pred_check_branch
    %16 = sbr.rel (0) target = $region9
  $region8: #{net_forward.1} parent=0 // pred_region
    _
  $region9: #{net_forward.1} parent=0 // pred_fallthru
    _
  // Predicated region
  $region10: #{net_forward.1} parent=0 // pred_check
    _
  $region11: #{net_forward.1} parent=0 // pred_check_branch
    %18 = sbr.rel (0) target = $region13
  $region12: #{net_forward.1} parent=0 // pred_region
    _
  $region13: #{net_forward.1} parent=0 // pred_fallthru
    _
  // Predicated region
  $region14: #{net_forward.1} parent=0 // pred_check
    _
  $region15: #{net_forward.1} parent=0 // pred_check_branch
    %20 = sbr.rel (0) target = $region17
  $region16: #{net_forward.1} parent=0 // pred_region
    _
  $region17: #{net_forward.1} parent=0 // pred_fallthru
    _
  // Predicated region
  $region18: #{net_forward.1} parent=0 // pred_check
    _
  $region19: #{net_forward.1} parent=0 // pred_check_branch
    %22 = sbr.rel (0) target = $region21
  $region20: #{net_forward.1} parent=0 // pred_region
    _
  $region21: #{net_forward.1} parent=0 // pred_fallthru
    _
  // Predicated region
  $region22: #{net_forward.1} parent=0 // pred_check
    _
  $region23: #{net_forward.1} parent=0 // pred_check_branch
    %24 = sbr.rel (0) target = $region25
  $region24: #{net_forward.1} parent=0 // pred_region
    _
  $region25: #{net_forward.1} parent=0 // pred_fallthru
    _
  // Predicated region
  $region26: #{net_forward.1} parent=0 // pred_check
    _
  $region27: #{net_forward.1} parent=0 // pred_check_branch
    %26 = sbr.rel (0) target = $region29
  $region28: #{net_forward.1} parent=0 // pred_region
    _
  $region29: #{net_forward.1} parent=0 // pred_fallthru
    _
  // Predicated region
  $region30: #{net_forward.1} parent=0 // pred_check
    _
  $region31: #{net_forward.1} parent=0 // pred_check_branch
    %28 = sbr.rel (0) target = $region33
  $region32: #{net_forward.1} parent=0 // pred_region
    _
  $region33: #{net_forward.1} parent=0 // pred_fallthru
    _
  %v30 = vld [vmem:[%s0] sm:$0xf]
  %v31 = vld [vmem:[%s0 + $0x4] sm:$0xf]
  %v32 = vld [vmem:[%s0 + $0x8] sm:$0xf]
  %v33 = vld [vmem:[%s0 + $0xc] sm:$0xf]
  %v34 = vld [vmem:[%s1] sm:$0xf]
  %v35 = vld [vmem:[%s1 + $0x4] sm:$0xf]
  %v36 = vld [vmem:[%s1 + $0x8] sm:$0xf]
  %v37 = vld [vmem:[%s1 + $0xc] sm:$0xf]
  %v42 = vunpack.c.l.b16 %v34
  %v43 = vunpack.c.l.b16 %v35
  %v44 = vunpack.c.l.b16 %v36
  %v45 = vunpack.c.l.b16 %v37
  %v46 = vpack.c.b16 %v43, %v42
  %v47 = vpack.c.b16 %v45, %v44
  %v52 = vunpack.c.l.b16 %v30
  %v53 = vunpack.c.l.b16 %v31
  %v54 = vunpack.c.l.b16 %v32
  %v55 = vunpack.c.l.b16 %v33
  %v56 = vpack.c.b16 %v53, %v52
  %v57 = vpack.c.b16 %v55, %v54
  %vm60 = vcmask 261120
  %v62 = vsel %vm60, %v46, 0
  %v65 = vsel %vm60, %v47, 0
  %67 = vmatprep.subr.bf16.mxu0 0
  %68 = vmatpush1.bf16.msra.mxu0 %v56
  %69 = vmatprep.subr.bf16.mxu0 0
  %70 = vmatpush1.bf16.msra.mxu0 %v57
  %71 = vmatprep.subr.bf16.mxu0 0
  %72 = vmatpush1.bf16.msra.mxu0 0
  %73 = vmatprep.subr.bf16.mxu0 0
  %74 = vmatpush1.bf16.msra.mxu0 0
  %75 = vmatprep.subr.bf16.mxu0 0
  %76 = vmatpush1.bf16.msra.mxu0 0
  %77 = vmatprep.subr.bf16.mxu0 0
  %78 = vmatpush1.bf16.msra.mxu0 0
  %79 = vmatprep.subr.bf16.mxu0 0
  %80 = vmatpush1.bf16.msra.mxu0 0
  %81 = vmatprep.subr.bf16.mxu0 0
  %82 = vmatpush1.bf16.msra.mxu0 0
  %83 = vmatprep.subr.bf16.mxu0 0
  %84 = vmatpush1.bf16.msra.mxu0 0
  %85 = vmatprep.subr.bf16.mxu0 0
  %86 = vmatpush1.bf16.msra.mxu0 0
  %87 = vmatprep.subr.bf16.mxu0 0
  %88 = vmatpush1.bf16.msra.mxu0 0
  %89 = vmatprep.subr.bf16.mxu0 0
  %90 = vmatpush1.bf16.msra.mxu0 0
  %91 = vmatprep.subr.bf16.mxu0 0
  %92 = vmatpush1.bf16.msra.mxu0 0
  %93 = vmatprep.subr.bf16.mxu0 0
  %94 = vmatpush1.bf16.msra.mxu0 0
  %95 = vmatprep.subr.bf16.mxu0 0
  %96 = vmatpush1.bf16.msra.mxu0 0
  %97 = vmatprep.subr.bf16.mxu0 0
  %98 = vmatpush1.bf16.msra.mxu0 0
  %99 = vmatprep.mubr.bf16.mxu0 0
  %100 = vmatmul.mubr.bf16.gmra.mrb[0].mxu0 %v62
  %v101 = vpop.f32.mrb[0].mxu0
  %v102 = vadd.f32 0.0, %v101
  %v103 = vpop.f32.mrb[0].mxu0
  %v104 = vpop.f32.mrb[0].mxu0
  %v105 = vadd.f32 0.0, %v104
  %v106 = vpop.f32.mrb[0].mxu0
  %107 = vmatprep.mubr.bf16.mxu0 0
  %108 = vmatmul.mubr.bf16.gmra.mrb[0].mxu0 %v65
  %v109 = vpop.f32.mrb[0].mxu0
  %v110 = vadd.f32 0.0, %v109
  %v111 = vpop.f32.mrb[0].mxu0
  %v112 = vpop.f32.mrb[0].mxu0
  %v113 = vadd.f32 0.0, %v112
  %v114 = vpop.f32.mrb[0].mxu0
  %115 = vdwg.mxu0
  %v116 = vld [vmem:[%s2] sm:$0xf]
  %v117 = vpack.c.bf16 %v105, %v102
  %v118 = vpack.c.bf16 %v113, %v110
  %v119 = vld [vmem:[%s3] sm:$0xf]
  %vm120 = vcmask 64512
  %v122 = vsel %vm120, %v117, 0
  %v125 = vsel %vm120, %v118, 0
  %vm127 = vcmask 1043456
  %v129 = vsel %vm127, %v119, 0
  %131 = vmatprep.subr.bf16.mxu0 0
  %132 = vmatpush1.bf16.msra.mxu0 %v129
  %133 = vmatprep.subr.bf16.mxu0 0
  %134 = vmatpush1.bf16.msra.mxu0 0
  %135 = vmatprep.subr.bf16.mxu0 0
  %136 = vmatpush1.bf16.msra.mxu0 0
  %137 = vmatprep.subr.bf16.mxu0 0
  %138 = vmatpush1.bf16.msra.mxu0 0
  %139 = vmatprep.subr.bf16.mxu0 0
  %140 = vmatpush1.bf16.msra.mxu0 0
  %141 = vmatprep.subr.bf16.mxu0 0
  %142 = vmatpush1.bf16.msra.mxu0 0
  %143 = vmatprep.subr.bf16.mxu0 0
  %144 = vmatpush1.bf16.msra.mxu0 0
  %145 = vmatprep.subr.bf16.mxu0 0
  %146 = vmatpush1.bf16.msra.mxu0 0
  %147 = vmatprep.subr.bf16.mxu0 0
  %148 = vmatpush1.bf16.msra.mxu0 0
  %149 = vmatprep.subr.bf16.mxu0 0
  %150 = vmatpush1.bf16.msra.mxu0 0
  %151 = vmatprep.subr.bf16.mxu0 0
  %152 = vmatpush1.bf16.msra.mxu0 0
  %153 = vmatprep.subr.bf16.mxu0 0
  %154 = vmatpush1.bf16.msra.mxu0 0
  %155 = vmatprep.subr.bf16.mxu0 0
  %156 = vmatpush1.bf16.msra.mxu0 0
  %157 = vmatprep.subr.bf16.mxu0 0
  %158 = vmatpush1.bf16.msra.mxu0 0
  %159 = vmatprep.subr.bf16.mxu0 0
  %160 = vmatpush1.bf16.msra.mxu0 0
  %161 = vmatprep.subr.bf16.mxu0 0
  %162 = vmatpush1.bf16.msra.mxu0 0
  %163 = vmatprep.mubr.bf16.mxu0 0
  %164 = vmatmul.mubr.bf16.gmra.mrb[0].mxu0 %v122
  %v165 = vpop.f32.mrb[0].mxu0
  %v166 = vadd.f32 0.0, %v165
  %v167 = vpop.f32.mrb[0].mxu0
  %v168 = vpop.f32.mrb[0].mxu0
  %v169 = vadd.f32 0.0, %v168
  %v170 = vpop.f32.mrb[0].mxu0
  %171 = vmatprep.mubr.bf16.mxu0 0
  %172 = vmatmul.mubr.bf16.gmra.mrb[0].mxu0 %v125
  %v173 = vpop.f32.mrb[0].mxu0
  %v174 = vadd.f32 0.0, %v173
  %v175 = vpop.f32.mrb[0].mxu0
  %v176 = vpop.f32.mrb[0].mxu0
  %v177 = vadd.f32 0.0, %v176
  %v178 = vpop.f32.mrb[0].mxu0
  %179 = vdwg.mxu0
  %v181 = vsel %vm120, %v56, 0
  %v184 = vsel %vm120, %v57, 0
  %v187 = vsel %vm127, %v116, 0
  %189 = vmatprep.subr.bf16.mxu0 0
  %190 = vmatpush1.bf16.msra.mxu0 %v187
  %191 = vmatprep.subr.bf16.mxu0 0
  %192 = vmatpush1.bf16.msra.mxu0 0
  %193 = vmatprep.subr.bf16.mxu0 0
  %194 = vmatpush1.bf16.msra.mxu0 0
  %195 = vmatprep.subr.bf16.mxu0 0
  %196 = vmatpush1.bf16.msra.mxu0 0
  %197 = vmatprep.subr.bf16.mxu0 0
  %198 = vmatpush1.bf16.msra.mxu0 0
  %199 = vmatprep.subr.bf16.mxu0 0
  %200 = vmatpush1.bf16.msra.mxu0 0
  %201 = vmatprep.subr.bf16.mxu0 0
  %202 = vmatpush1.bf16.msra.mxu0 0
  %203 = vmatprep.subr.bf16.mxu0 0
  %204 = vmatpush1.bf16.msra.mxu0 0
  %205 = vmatprep.subr.bf16.mxu0 0
  %206 = vmatpush1.bf16.msra.mxu0 0
  %207 = vmatprep.subr.bf16.mxu0 0
  %208 = vmatpush1.bf16.msra.mxu0 0
  %209 = vmatprep.subr.bf16.mxu0 0
  %210 = vmatpush1.bf16.msra.mxu0 0
  %211 = vmatprep.subr.bf16.mxu0 0
  %212 = vmatpush1.bf16.msra.mxu0 0
  %213 = vmatprep.subr.bf16.mxu0 0
  %214 = vmatpush1.bf16.msra.mxu0 0
  %215 = vmatprep.subr.bf16.mxu0 0
  %216 = vmatpush1.bf16.msra.mxu0 0
  %217 = vmatprep.subr.bf16.mxu0 0
  %218 = vmatpush1.bf16.msra.mxu0 0
  %219 = vmatprep.subr.bf16.mxu0 0
  %220 = vmatpush1.bf16.msra.mxu0 0
  %221 = vmatprep.mubr.bf16.mxu0 0
  %222 = vmatmul.mubr.bf16.gmra.mrb[0].mxu0 %v181
  %v223 = vpop.f32.mrb[0].mxu0
  %v224 = vadd.f32 %v166, %v223
  %v225 = vpop.f32.mrb[0].mxu0
  %v226 = vpop.f32.mrb[0].mxu0
  %v227 = vadd.f32 %v169, %v226
  %v228 = vpop.f32.mrb[0].mxu0
  %229 = vmatprep.mubr.bf16.mxu0 0
  %230 = vmatmul.mubr.bf16.gmra.mrb[0].mxu0 %v184
  %v231 = vpop.f32.mrb[0].mxu0
  %v232 = vadd.f32 %v174, %v231
  %v233 = vpop.f32.mrb[0].mxu0
  %v234 = vpop.f32.mrb[0].mxu0
  %v235 = vadd.f32 %v177, %v234
  %v236 = vpop.f32.mrb[0].mxu0
  %237 = vdwg.mxu0
  %v238 = vld [vmem:[%s4] sm:$0x1]
  %v240 = vlaneseq
  %v241 = vshrl.u32 %v240, 7
  %v242 = vsub.s32 0, %v241
  %v243 = vrot.slane %v238, %v242
  %v245 = vadd.f32 %v224, %v243
  %v246 = vadd.f32 %v227, %v243
  %v247 = vadd.f32 %v232, %v243
  %v248 = vadd.f32 %v235, %v243
  %v249 = vmax.f32 %v245, 0.0
  %v250 = vmax.f32 %v246, 0.0
  %v251 = vmax.f32 %v247, 0.0
  %v252 = vmax.f32 %v248, 0.0
  %v253 = vpack.c.bf16 %v250, %v249
  %v254 = vpack.c.bf16 %v252, %v251
  %v255 = vld [vmem:[%s5] sm:$0xf]
  %v256 = vld [vmem:[%s5 + $0x4] sm:$0xf]
  %v257 = vld [vmem:[%s6] sm:$0xf]
  %v258 = vld [vmem:[%s6 + $0x4] sm:$0xf]
  %v261 = vunpack.c.l.b16 %v257
  %v262 = vunpack.c.l.b16 %v258
  %v263 = vpack.c.b16 %v262, %v261
  %vm265 = vcmask 130048
  %v267 = vsel %vm265, %v253, 0
  %v270 = vsel %vm265, %v254, 0
  %272 = vmatprep.subr.bf16.mxu0 0
  %273 = vmatpush1.bf16.msra.mxu0 %v263
  %274 = vmatprep.subr.bf16.mxu0 0
  %275 = vmatpush1.bf16.msra.mxu0 0
  %276 = vmatprep.subr.bf16.mxu0 0
  %277 = vmatpush1.bf16.msra.mxu0 0
  %278 = vmatprep.subr.bf16.mxu0 0
  %279 = vmatpush1.bf16.msra.mxu0 0
  %280 = vmatprep.subr.bf16.mxu0 0
  %281 = vmatpush1.bf16.msra.mxu0 0
  %282 = vmatprep.subr.bf16.mxu0 0
  %283 = vmatpush1.bf16.msra.mxu0 0
  %284 = vmatprep.subr.bf16.mxu0 0
  %285 = vmatpush1.bf16.msra.mxu0 0
  %286 = vmatprep.subr.bf16.mxu0 0
  %287 = vmatpush1.bf16.msra.mxu0 0
  %288 = vmatprep.subr.bf16.mxu0 0
  %289 = vmatpush1.bf16.msra.mxu0 0
  %290 = vmatprep.subr.bf16.mxu0 0
  %291 = vmatpush1.bf16.msra.mxu0 0
  %292 = vmatprep.subr.bf16.mxu0 0
  %293 = vmatpush1.bf16.msra.mxu0 0
  %294 = vmatprep.subr.bf16.mxu0 0
  %295 = vmatpush1.bf16.msra.mxu0 0
  %296 = vmatprep.subr.bf16.mxu0 0
  %297 = vmatpush1.bf16.msra.mxu0 0
  %298 = vmatprep.subr.bf16.mxu0 0
  %299 = vmatpush1.bf16.msra.mxu0 0
  %300 = vmatprep.subr.bf16.mxu0 0
  %301 = vmatpush1.bf16.msra.mxu0 0
  %302 = vmatprep.subr.bf16.mxu0 0
  %303 = vmatpush1.bf16.msra.mxu0 0
  %304 = vmatprep.mubr.bf16.mxu0 0
  %305 = vmatmul.mubr.bf16.gmra.mrb[0].mxu0 %v267
  %v306 = vpop.f32.mrb[0].mxu0
  %v307 = vadd.f32 0.0, %v306
  %v308 = vpop.f32.mrb[0].mxu0
  %v309 = vpop.f32.mrb[0].mxu0
  %v310 = vadd.f32 0.0, %v309
  %v311 = vpop.f32.mrb[0].mxu0
  %312 = vmatprep.mubr.bf16.mxu0 0
  %313 = vmatmul.mubr.bf16.gmra.mrb[0].mxu0 %v270
  %v314 = vpop.f32.mrb[0].mxu0
  %v315 = vadd.f32 0.0, %v314
  %v316 = vpop.f32.mrb[0].mxu0
  %v317 = vpop.f32.mrb[0].mxu0
  %v318 = vadd.f32 0.0, %v317
  %v319 = vpop.f32.mrb[0].mxu0
  %320 = vdwg.mxu0
  %v321 = vpack.c.bf16 %v310, %v307
  %v322 = vpack.c.bf16 %v318, %v315
  %323 = vmatprep.subr.bf16.mxu0 0
  %324 = vmatpush1.bf16.msra.mxu0 %v321
  %325 = vmatprep.subr.bf16.mxu0 0
  %326 = vmatpush1.bf16.msra.mxu0 %v322
  %327 = vmatprep.subr.bf16.mxu0 0
  %328 = vmatpush1.bf16.msra.mxu0 0
  %329 = vmatprep.subr.bf16.mxu0 0
  %330 = vmatpush1.bf16.msra.mxu0 0
  %331 = vmatprep.subr.bf16.mxu0 0
  %332 = vmatpush1.bf16.msra.mxu0 0
  %333 = vmatprep.subr.bf16.mxu0 0
  %334 = vmatpush1.bf16.msra.mxu0 0
  %335 = vmatprep.subr.bf16.mxu0 0
  %336 = vmatpush1.bf16.msra.mxu0 0
  %337 = vmatprep.subr.bf16.mxu0 0
  %338 = vmatpush1.bf16.msra.mxu0 0
  %339 = vmatprep.subr.bf16.mxu0 0
  %340 = vmatpush1.bf16.msra.mxu0 0
  %341 = vmatprep.subr.bf16.mxu0 0
  %342 = vmatpush1.bf16.msra.mxu0 0
  %343 = vmatprep.subr.bf16.mxu0 0
  %344 = vmatpush1.bf16.msra.mxu0 0
  %345 = vmatprep.subr.bf16.mxu0 0
  %346 = vmatpush1.bf16.msra.mxu0 0
  %347 = vmatprep.subr.bf16.mxu0 0
  %348 = vmatpush1.bf16.msra.mxu0 0
  %349 = vmatprep.subr.bf16.mxu0 0
  %350 = vmatpush1.bf16.msra.mxu0 0
  %351 = vmatprep.subr.bf16.mxu0 0
  %352 = vmatpush1.bf16.msra.mxu0 0
  %353 = vmatprep.subr.bf16.mxu0 0
  %354 = vmatpush1.bf16.msra.mxu0 0
  %355 = vmatprep.mubr.bf16.mxu0 0
  %356 = vmatmul.mubr.bf16.gmra.mrb[0].mxu0 %v62
  %v357 = vpop.f32.mrb[0].mxu0
  %v358 = vadd.f32 0.0, %v357
  %v359 = vpop.f32.mrb[0].mxu0
  %v360 = vpop.f32.mrb[0].mxu0
  %v361 = vadd.f32 0.0, %v360
  %v362 = vpop.f32.mrb[0].mxu0
  %363 = vmatprep.mubr.bf16.mxu0 0
  %364 = vmatmul.mubr.bf16.gmra.mrb[0].mxu0 %v65
  %v365 = vpop.f32.mrb[0].mxu0
  %v366 = vadd.f32 0.0, %v365
  %v367 = vpop.f32.mrb[0].mxu0
  %v368 = vpop.f32.mrb[0].mxu0
  %v369 = vadd.f32 0.0, %v368
  %v370 = vpop.f32.mrb[0].mxu0
  %371 = vdwg.mxu0
  %v374 = vunpack.c.l.b16 %v255
  %v375 = vunpack.c.l.b16 %v256
  %v376 = vpack.c.b16 %v375, %v374
  %378 = vmatprep.subr.bf16.mxu0 0
  %379 = vmatpush1.bf16.msra.mxu0 %v376
  %380 = vmatprep.subr.bf16.mxu0 0
  %381 = vmatpush1.bf16.msra.mxu0 0
  %382 = vmatprep.subr.bf16.mxu0 0
  %383 = vmatpush1.bf16.msra.mxu0 0
  %384 = vmatprep.subr.bf16.mxu0 0
  %385 = vmatpush1.bf16.msra.mxu0 0
  %386 = vmatprep.subr.bf16.mxu0 0
  %387 = vmatpush1.bf16.msra.mxu0 0
  %388 = vmatprep.subr.bf16.mxu0 0
  %389 = vmatpush1.bf16.msra.mxu0 0
  %390 = vmatprep.subr.bf16.mxu0 0
  %391 = vmatpush1.bf16.msra.mxu0 0
  %392 = vmatprep.subr.bf16.mxu0 0
  %393 = vmatpush1.bf16.msra.mxu0 0
  %394 = vmatprep.subr.bf16.mxu0 0
  %395 = vmatpush1.bf16.msra.mxu0 0
  %396 = vmatprep.subr.bf16.mxu0 0
  %397 = vmatpush1.bf16.msra.mxu0 0
  %398 = vmatprep.subr.bf16.mxu0 0
  %399 = vmatpush1.bf16.msra.mxu0 0
  %400 = vmatprep.subr.bf16.mxu0 0
  %401 = vmatpush1.bf16.msra.mxu0 0
  %402 = vmatprep.subr.bf16.mxu0 0
  %403 = vmatpush1.bf16.msra.mxu0 0
  %404 = vmatprep.subr.bf16.mxu0 0
  %405 = vmatpush1.bf16.msra.mxu0 0
  %406 = vmatprep.subr.bf16.mxu0 0
  %407 = vmatpush1.bf16.msra.mxu0 0
  %408 = vmatprep.subr.bf16.mxu0 0
  %409 = vmatpush1.bf16.msra.mxu0 0
  %410 = vmatprep.mubr.bf16.mxu0 0
  %411 = vmatmul.mubr.bf16.gmra.mrb[0].mxu0 %v267
  %v412 = vpop.f32.mrb[0].mxu0
  %v413 = vadd.f32 %v358, %v412
  %v414 = vpop.f32.mrb[0].mxu0
  %v415 = vpop.f32.mrb[0].mxu0
  %v416 = vadd.f32 %v361, %v415
  %v417 = vpop.f32.mrb[0].mxu0
  %418 = vmatprep.mubr.bf16.mxu0 0
  %419 = vmatmul.mubr.bf16.gmra.mrb[0].mxu0 %v270
  %v420 = vpop.f32.mrb[0].mxu0
  %v421 = vadd.f32 %v366, %v420
  %v422 = vpop.f32.mrb[0].mxu0
  %v423 = vpop.f32.mrb[0].mxu0
  %v424 = vadd.f32 %v369, %v423
  %v425 = vpop.f32.mrb[0].mxu0
  %426 = vdwg.mxu0
  %v427 = vld [vmem:[%s7] sm:$0x1]
  %v429 = vlaneseq
  %v430 = vshrl.u32 %v429, 7
  %v431 = vsub.s32 0, %v430
  %v432 = vrot.slane %v427, %v431
  %v434 = vadd.f32 %v413, %v432
  %v435 = vadd.f32 %v416, %v432
  %v436 = vadd.f32 %v421, %v432
  %v437 = vadd.f32 %v424, %v432
  %438 = vmax.xlane.f32.xlu0 %v434
  %v439 = vpop.xlane.xlu0 %438
  %440 = vmax.xlane.f32.xlu0 %v435
  %v441 = vpop.xlane.xlu0 %440
  %442 = vmax.xlane.f32.xlu0 %v436
  %v443 = vpop.xlane.xlu0 %442
  %444 = vmax.xlane.f32.xlu0 %v437
  %v445 = vpop.xlane.xlu0 %444
  %v446 = vsub.f32 %v434, %v439
  %v447 = vsub.f32 %v435, %v441
  %v448 = vsub.f32 %v436, %v443
  %v449 = vsub.f32 %v437, %v445
  %v450 = vmul.f32 %v446, 1.442695
  %v451 = vpow.pop %v450
  %v452 = vmul.f32 %v447, 1.442695
  %v453 = vpow.pop %v452
  %v454 = vmul.f32 %v448, 1.442695
  %v455 = vpow.pop %v454
  %v456 = vmul.f32 %v449, 1.442695
  %v457 = vpow.pop %v456
  %458 = vadd.xlane.f32.xlu0 %v451
  %v459 = vpop.xlane.xlu0 %458
  %460 = vadd.xlane.f32.xlu0 %v453
  %v461 = vpop.xlane.xlu0 %460
  %462 = vadd.xlane.f32.xlu0 %v455
  %v463 = vpop.xlane.xlu0 %462
  %464 = vadd.xlane.f32.xlu0 %v457
  %v465 = vpop.xlane.xlu0 %464
  %v466 = vlog2.pop %v459
  %v467 = vmul.f32 %v466, 0.6931472
  %v468 = vlog2.pop %v461
  %v469 = vmul.f32 %v468, 0.6931472
  %v470 = vlog2.pop %v463
  %v471 = vmul.f32 %v470, 0.6931472
  %v472 = vlog2.pop %v465
  %v473 = vmul.f32 %v472, 0.6931472
  %v474 = vsub.f32 %v446, %v467
  %v475 = vsub.f32 %v447, %v469
  %v476 = vsub.f32 %v448, %v471
  %v477 = vsub.f32 %v449, %v473
  %478 = vst [vmem:[%s8] sm:$0xff] %v474
  %479 = vst [vmem:[%s8 + $0x8] sm:$0xff] %v475
  %480 = vst [vmem:[%s8 + $0x10] sm:$0xff] %v476
  %481 = vst [vmem:[%s8 + $0x18] sm:$0xff] %v477
  // Predicated region
  $region34: #{net_forward.1} parent=0 // pred_check
    _
  $region35: #{net_forward.1} parent=0 // pred_check_branch
    %483 = sbr.rel (0) target = $region37
  $region36: #{net_forward.1} parent=0 // pred_region
    _
  $region37: #{net_forward.1} parent=0 // pred_fallthru
    _
  // Predicated region
  $region38: #{net_forward.1} parent=0 // pred_check
    _
  $region39: #{net_forward.1} parent=0 // pred_check_branch
    %485 = sbr.rel (0) target = $region41
  $region40: #{net_forward.1} parent=0 // pred_region
    _
  $region41: #{net_forward.1} parent=0 // pred_fallthru
    _

</llo_original>
